<compile_context>
chip_gen: v5e
topology: v5e:2x2
jax: 0.10.0
libtpu: 0.0.40
codegen_flags: <defaults>
</compile_context>

<pallas_src>
import numpy as np
import jax
import jax.numpy as jnp
from jax.experimental import pallas as pl
from jax.experimental.pallas import tpu as pltpu

TWO_PI = 2.0 * np.pi

# Odd Taylor coefficients of sin(2*pi*r), accurate on r in [-0.25, 0.25]
# (max truncation error ~6e-8 after the reflection below).
_S1 = 6.283185307179586        #  (2*pi)
_S3 = -41.341702240399755      # -(2*pi)^3 / 3!
_S5 = 81.60524927607504        #  (2*pi)^5 / 5!
_S7 = -76.70585975306136       # -(2*pi)^7 / 7!
_S9 = 42.05869394489765        #  (2*pi)^9 / 9!
_S11 = -15.094642576822022     # -(2*pi)^11 / 11!


def _round_up(x, m):
    return ((x + m - 1) // m) * m


def _sin_two_pi(t):
    """sin(2*pi*t) via turns-based range reduction + short odd polynomial.

    Cheaper than jnp.sin(2*pi*t): one round + one reflection on the VPU,
    then 6 FMAs + 2 muls, no libm-style generic range reduction.
    """
    r = t - jnp.round(t)                                   # r in [-0.5, 0.5]
    half = jnp.where(r >= 0.0, 0.5, -0.5)
    r = jnp.where(jnp.abs(r) > 0.25, half - r, r)          # reflect -> [-0.25, 0.25]
    z = r * r
    p = _S11
    p = p * z + _S9
    p = p * z + _S7
    p = p * z + _S5
    p = p * z + _S3
    p = p * z + _S1
    return p * r


def _sinusoidal_kernel(x_ref, wt_ref, b_ref, o_ref):
    # x_ref : (tm, K)  block of input rows, full contraction dim resident
    # wt_ref: (K, tn)  transposed weight tile (lane-dense on features)
    # b_ref : (1, tn)  bias tile (broadcast over rows)
    # o_ref : (tm, tn) output tile
    t = jnp.dot(x_ref[...], wt_ref[...], preferred_element_type=jnp.float32)
    t = t + b_ref[...]                       # projection in "turns"
    o_ref[...] = _sin_two_pi(t).astype(o_ref.dtype)


def prepare_params(W, b):
    """One-time (init-time) parameter prep: keep this out of the forward path."""
    Wt = jnp.asarray(W, jnp.float32).T               # [K, N], lane-dense on N
    b2 = jnp.asarray(b, jnp.float32).reshape(1, -1)  # [1, N]
    return Wt, b2


def sinusoidal_mapping(x, Wt, b2, *, tm_max=1024, tn_max=512, out_dtype=None):
    """x: [M, K], Wt: [K, N], b2: [1, N] -> sin(2*pi*(x @ W.T + b)) : [M, N]."""
    M, K = x.shape
    K2, N = Wt.shape
    assert K == K2, "input_dim mismatch"
    out_dtype = x.dtype if out_dtype is None else out_dtype

    # --- feature tiling ------------------------------------------------------
    # N < 128: full-dim block (masked stores cost less than 4x padded writeback).
    # N >= 128: 128-multiple tile; ragged last block is masked by Pallas.
    if N < 128:
        tn = N
    else:
        tn = 128 * max(1, min(tn_max // 128, N // 128))
    grid_n = pl.cdiv(N, tn)

    # --- row tiling -----------------------------------------------------------
    # Balanced tile: tm ~= ceil(M / ceil(M / tm_max)), rounded to a sublane
    # multiple.  Ragged last row block is handled by Pallas (no pad/slice pass).
    tm = _round_up(pl.cdiv(M, pl.cdiv(M, tm_max)), 8)
    tm = min(tm, _round_up(M, 8))
    grid_m = pl.cdiv(M, tm)

    # v7x megacore: if the whole problem is a single grid step but M is big
    # enough to split, give each TensorCore a row chunk.
    if grid_m * grid_n == 1 and M >= 256:
        tm = _round_up(pl.cdiv(M, 2), 8)
        grid_m = pl.cdiv(M, tm)

    grid = (grid_m, grid_n)

    out_bytes = jnp.dtype(out_dtype).itemsize
    cost = pl.CostEstimate(
        flops=2 * M * K * N + 16 * M * N,      # matmul + sin polynomial
        transcendentals=0,
        bytes_accessed=4 * (M * K + K * N + N) + out_bytes * M * N,
    )

    return pl.pallas_call(
        _sinusoidal_kernel,
        out_shape=jax.ShapeDtypeStruct((M, N), out_dtype),
        grid_spec=pltpu.PrefetchScalarGridSpec(
            num_scalar_prefetch=0,
            grid=grid,
            in_specs=[
                pl.BlockSpec((tm, K), lambda i, j: (i, 0)),   # x rows, full K
                pl.BlockSpec((K, tn), lambda i, j: (0, j)),   # Wt feature tile
                pl.BlockSpec((1, tn), lambda i, j: (0, j)),   # bias feature tile
            ],
            out_specs=pl.BlockSpec((tm, tn), lambda i, j: (i, j)),
        ),
        compiler_params=pltpu.CompilerParams(
            dimension_semantics=("parallel", "parallel"),
        ),
        cost_estimate=cost,
    )(x, Wt, b2)


if __name__ == "__main__":
    # Module config (small, consistent with the forward semantics).
    input_dim = 4
    num_features = 32
    batch = 8
    sigma = 1.0

    key = jax.random.PRNGKey(0)
    kx, kw = jax.random.split(key)

    # Deterministic parameter init mirroring __init__:
    #   W = randn(num_features, input_dim) * sigma^2 ;  b = zeros(num_features)
    W = jax.random.normal(kw, (num_features, input_dim), dtype=jnp.float32) * (sigma * sigma)
    b = jnp.zeros((num_features,), dtype=jnp.float32)
    x = jax.random.normal(kx, (batch, input_dim), dtype=jnp.float32)

    # Init-time prep (hoisted out of the forward path).
    Wt, b2 = prepare_params(W, b)

    y = sinusoidal_mapping(x, Wt, b2)
    jax.block_until_ready(y)

    # High-precision reference (float64 on CPU via numpy).
    xn = np.asarray(x, np.float64)
    Wn = np.asarray(W, np.float64)
    bn = np.asarray(b, np.float64)
    y_ref = np.sin(TWO_PI * (xn @ Wn.T + bn))
    np.testing.assert_allclose(np.asarray(y), y_ref, atol=5e-5, rtol=1e-5)

    print("KERNEL_OK")
</pallas_src>

<mosaic_0001>
module attributes {stable_mosaic.version = 11 : i64} {
  func.func @_sinusoidal_kernel(%arg0: i32, %arg1: i32, %arg2: memref<8x4xf32, #tpu.memory_space<vmem>>, %arg3: memref<4x32xf32, #tpu.memory_space<vmem>>, %arg4: memref<1x32xf32, #tpu.memory_space<vmem>>, %arg5: memref<8x32xf32, #tpu.memory_space<vmem>>) attributes {dimension_semantics = [#tpu.dimension_semantics<parallel>, #tpu.dimension_semantics<parallel>], iteration_bounds = array<i64: 1, 1>, scalar_prefetch = 0 : i64, scratch_operands = 0 : i64, tpu.core_type = #tpu.core_type<tc>, window_params = [{transform_indices = @transform_0, window_bounds = array<i64: 8, 4>}, {transform_indices = @transform_1, window_bounds = array<i64: 4, 32>}, {transform_indices = @transform_2, window_bounds = array<i64: 1, 32>}, {transform_indices = @transform_3, window_bounds = array<i64: 8, 32>}]} {
    %c0 = arith.constant 0 : index
    %c0_0 = arith.constant 0 : index
    %0 = vector.load %arg2[%c0, %c0_0] : memref<8x4xf32, #tpu.memory_space<vmem>>, vector<8x4xf32>
    %c0_1 = arith.constant 0 : index
    %c0_2 = arith.constant 0 : index
    %1 = vector.load %arg3[%c0_1, %c0_2] : memref<4x32xf32, #tpu.memory_space<vmem>>, vector<4x32xf32>
    %cst = arith.constant dense<0.000000e+00> : vector<8x32xf32>
    %2 = tpu.matmul %0, %1, %cst {dimension_numbers = #tpu.dot_dimension_numbers<[1], [0], [0], [1], [0, 0, 1, 1], [], []>} : vector<8x4xf32>, vector<4x32xf32>, vector<8x32xf32> -> vector<8x32xf32>
    %c0_3 = arith.constant 0 : index
    %c0_4 = arith.constant 0 : index
    %3 = vector.load %arg4[%c0_3, %c0_4] : memref<1x32xf32, #tpu.memory_space<vmem>>, vector<1x32xf32>
    %4 = vector.broadcast %3 : vector<1x32xf32> to vector<8x32xf32>
    %5 = arith.addf %2, %4 : vector<8x32xf32>
    %6 = math.roundeven %5 : vector<8x32xf32>
    %7 = arith.subf %5, %6 : vector<8x32xf32>
    %cst_5 = arith.constant 0.000000e+00 : f32
    %8 = vector.broadcast %cst_5 : f32 to vector<8x32xf32>
    %9 = arith.cmpf oge, %7, %8 : vector<8x32xf32>
    %cst_6 = arith.constant 5.000000e-01 : f32
    %cst_7 = arith.constant -5.000000e-01 : f32
    %10 = vector.broadcast %cst_6 : f32 to vector<8x32xf32>
    %11 = vector.broadcast %cst_7 : f32 to vector<8x32xf32>
    %12 = arith.select %9, %10, %11 : vector<8x32xi1>, vector<8x32xf32>
    %13 = math.absf %7 : vector<8x32xf32>
    %cst_8 = arith.constant 2.500000e-01 : f32
    %14 = vector.broadcast %cst_8 : f32 to vector<8x32xf32>
    %15 = arith.cmpf ogt, %13, %14 : vector<8x32xf32>
    %16 = arith.subf %12, %7 : vector<8x32xf32>
    %17 = arith.select %15, %16, %7 : vector<8x32xi1>, vector<8x32xf32>
    %18 = arith.mulf %17, %17 : vector<8x32xf32>
    %cst_9 = arith.constant -15.0946426 : f32
    %19 = vector.broadcast %cst_9 : f32 to vector<8x32xf32>
    %20 = arith.mulf %19, %18 : vector<8x32xf32>
    %cst_10 = arith.constant 42.0586929 : f32
    %21 = vector.broadcast %cst_10 : f32 to vector<8x32xf32>
    %22 = arith.addf %20, %21 : vector<8x32xf32>
    %23 = arith.mulf %22, %18 : vector<8x32xf32>
    %cst_11 = arith.constant -76.7058563 : f32
    %24 = vector.broadcast %cst_11 : f32 to vector<8x32xf32>
    %25 = arith.addf %23, %24 : vector<8x32xf32>
    %26 = arith.mulf %25, %18 : vector<8x32xf32>
    %cst_12 = arith.constant 81.6052475 : f32
    %27 = vector.broadcast %cst_12 : f32 to vector<8x32xf32>
    %28 = arith.addf %26, %27 : vector<8x32xf32>
    %29 = arith.mulf %28, %18 : vector<8x32xf32>
    %cst_13 = arith.constant -4.134170e+01 : f32
    %30 = vector.broadcast %cst_13 : f32 to vector<8x32xf32>
    %31 = arith.addf %29, %30 : vector<8x32xf32>
    %32 = arith.mulf %31, %18 : vector<8x32xf32>
    %cst_14 = arith.constant 6.28318548 : f32
    %33 = vector.broadcast %cst_14 : f32 to vector<8x32xf32>
    %34 = arith.addf %32, %33 : vector<8x32xf32>
    %35 = arith.mulf %34, %17 : vector<8x32xf32>
    %c0_15 = arith.constant 0 : index
    %c0_16 = arith.constant 0 : index
    %36 = vector.load %arg5[%c0_15, %c0_16] : memref<8x32xf32, #tpu.memory_space<vmem>>, vector<8x32xf32>
    tpu.vector_store %arg5[%c0_15, %c0_16], %35 {strides = array<i32>} : memref<8x32xf32, #tpu.memory_space<vmem>>, vector<8x32xf32>,
    return
  }
  func.func @transform_0(%arg0: i32, %arg1: i32) -> (i32, i32) {
    %c0_i32 = arith.constant 0 : i32
    %c0_i32_0 = arith.constant 0 : i32
    return %arg0, %c0_i32 : i32, i32
  }
  func.func @transform_1(%arg0: i32, %arg1: i32) -> (i32, i32) {
    %c0_i32 = arith.constant 0 : i32
    %c0_i32_0 = arith.constant 0 : i32
    return %c0_i32, %arg1 : i32, i32
  }
  func.func @transform_2(%arg0: i32, %arg1: i32) -> (i32, i32) {
    %c0_i32 = arith.constant 0 : i32
    %c0_i32_0 = arith.constant 0 : i32
    return %c0_i32, %arg1 : i32, i32
  }
  func.func @transform_3(%arg0: i32, %arg1: i32) -> (i32, i32) {
    %c0_i32 = arith.constant 0 : i32
    return %arg0, %arg1 : i32, i32
  }
}

</mosaic_0001>

<llo_original>
// kernel: tpu_custom_call.1
$region0: #{tpu_custom_call.1}
  #allocation0 [shape = 'u32[]', space=smem, size = 0x4, offset = 0x4, fixed_abs, tag = 'smem constant byte address 0x4 - core index']
  #allocation1 [shape = 'u32[72,128]{1,0:T(1,128)}', space=vmem, size = 0x9000, scoped, tag = 'internal scratch']
  %s0 = inlined_call_operand.vmem [shape: f32[8,4], index: 0, kind: input, shape index: {}]
  %s1 = inlined_call_operand.vmem [shape: f32[4,32], index: 1, kind: input, shape index: {}]
  %s2 = inlined_call_operand.vmem [shape: f32[1,32], index: 2, kind: input, shape index: {}]
  %s3 = inlined_call_operand.hbm [shape: f32[8,32], index: 3, kind: output, shape index: {}]
  %s4 = sld [smem:[#allocation0]]
  $region22: #{tpu_custom_call.1} parent=0
    _
  %s6 = ssub.s32 1, %s4
  %s7 = scalar_select 0, %s6, %s4
  $region1: #{tpu_custom_call.1} parent=0
    #allocation2 [shape = 'u8[4096]{0}', space=vmem, size = 0x1000, scoped, tag = 'output window, operand 0, single buffered']
    #allocation3 [shape = 's32[1]{0}', space=sflag, size = 0x4, scoped, tag = 'scoped memory for tpu_custom_call.1']
    %8 = vsyncpa [#allocation3], 0
    // Predicated region
    $region2: #{tpu_custom_call.1} parent=1 // pred_check
      _
    $region3: #{tpu_custom_call.1} parent=1 // pred_check_branch
      %10 = sbr.rel (0) target = $region5
    $region4: #{tpu_custom_call.1} parent=1 // pred_region
      _
    $region5: #{tpu_custom_call.1} parent=1 // pred_fallthru
      _
    // Predicated region
    $region6: #{tpu_custom_call.1} parent=1 // pred_check
      _
    $region7: #{tpu_custom_call.1} parent=1 // pred_check_branch
      %12 = sbr.rel (0) target = $region9
    $region8: #{tpu_custom_call.1} parent=1 // pred_region
      _
    $region9: #{tpu_custom_call.1} parent=1 // pred_fallthru
      _
    // Predicated region
    $region10: #{tpu_custom_call.1} parent=1 // pred_check
      _
    $region11: #{tpu_custom_call.1} parent=1 // pred_check_branch
      %14 = sbr.rel (0) target = $region13
    $region12: #{tpu_custom_call.1} parent=1 // pred_region
      _
    $region13: #{tpu_custom_call.1} parent=1 // pred_fallthru
      _
    %v15 = vld [vmem:[%s0] sm:$0xff]
    %v16 = vld [vmem:[%s1] sm:$0xf]
    %v17 = vld [vmem:[%s2] sm:$0x1]
    %v19 = vperm.slane %v17, 0
    %vm21 = vcmask 31744
    %v23 = vsel %vm21, %v15, 0
    %vm25 = vcmask 1043456
    %v27 = vsel %vm25, %v16, 0
    %29 = vmatpush.msra.mxu0 0.0
    %30 = vmatpush.msra.mxu0 0.0
    %31 = vmatpush.msra.mxu0 0.0
    %32 = vmatpush.msra.mxu0 0.0
    %33 = vmatpush.msra.mxu0 0.0
    %34 = vmatpush.msra.mxu0 0.0
    %35 = vmatpush.msra.mxu0 0.0
    %36 = vmatpush.msra.mxu0 0.0
    %37 = vmatpush.msra.mxu0 0.0
    %38 = vmatpush.msra.mxu0 0.0
    %39 = vmatpush.msra.mxu0 0.0
    %40 = vmatpush.msra.mxu0 0.0
    %41 = vmatpush.msra.mxu0 0.0
    %42 = vmatpush.msra.mxu0 0.0
    %43 = vmatpush.msra.mxu0 0.0
    %44 = vmatpush.msra.mxu0 %v27
    %45 = vmatmul.f32.gmra.mxu0 %v23
    %v46 = vpop.f32.mrf.mxu0
    %v47 = vadd.f32 %v19, %v46
    %48 = vdwg.mxu0
    %v49 = vround.ne.pseudo %v47
    %v50 = vsub.f32 %v47, %v49
    %vm51 = vcmp.ge.f32.partialorder %v50, 0.0
    %v52 = vsel %vm51, 0.5, -0.5
    %v53 = vand.u32 2147483647, %v50
    %vm54 = vcmp.gt.f32.partialorder %v53, 0.25
    %v55 = vsub.f32 %v52, %v50
    %v56 = vsel %vm54, %v55, %v50
    %v57 = vmul.f32 %v56, %v56
    %v58 = vmul.f32 %v57, -15.094643
    %v59 = vadd.f32 %v58, 42.058693
    %v60 = vmul.f32 %v59, %v57
    %v61 = vadd.f32 %v60, -76.70586
    %v62 = vmul.f32 %v61, %v57
    %v63 = vadd.f32 %v62, 81.60525
    %v64 = vmul.f32 %v63, %v57
    %v65 = vadd.f32 %v64, -41.3417
    %v66 = vmul.f32 %v65, %v57
    %v67 = vadd.f32 %v66, 6.2831855
    %v68 = vmul.f32 %v67, %v56
    %vm69 = vcmask 261120
    %70 = vst.msk [vmem:[#allocation2] sm:$0xff] %vm69, %v68
    // Predicated region
    $region14: #{tpu_custom_call.1} parent=1 // pred_check
      _
    $region15: #{tpu_custom_call.1} parent=1 // pred_check_branch
      %72 = sbr.rel (0) target = $region17
    $region16: #{tpu_custom_call.1} parent=1 // pred_region
      %74 = vsyncadd [#allocation3], 0
      %s76 = sshll.u32 [#allocation2], 4
      %s77 = int_to_ptr.vmem [resolvable:$true] %s76
      %s78 = sshll.u32 %s3, 4
      %s79 = int_to_ptr.hbm [resolvable:$true] %s78
      %81 = dma.vmem_to_hbm [thread:$0]  %s77, 128, %s79, [#allocation3]
    $region17: #{tpu_custom_call.1} parent=1 // pred_fallthru
      _
    // Predicated region
    $region18: #{tpu_custom_call.1} parent=1 // pred_check
      _
    $region19: #{tpu_custom_call.1} parent=1 // pred_check_branch
      %83 = sbr.rel (0) target = $region21
    $region20: #{tpu_custom_call.1} parent=1 // pred_region
      %85 = dma.done [#allocation3], 128
    $region21: #{tpu_custom_call.1} parent=1 // pred_fallthru
      _
    %86 = vsyncpa [#allocation3], 1

</llo_original>
